<compile_context>
chip_gen: v6e
topology: v6e:2x2x1
jax: 0.10.0
libtpu: 0.0.40
codegen_flags: <defaults>
</compile_context>

<pallas_src>
import jax
import jax.numpy as jnp
from jax.experimental import pallas as pl
from jax.experimental.pallas import tpu as pltpu


def _mish_kernel(x_ref, o_ref):
    x = x_ref[...].astype(jnp.float32)
    # tanh(softplus(x)) == (t^2 + 2t) / (t^2 + 2t + 2),  t = exp(x).
    # One exp on the EUP instead of exp + log1p + tanh.  No clamp needed:
    # for x > 20 the final select returns x, masking any inf/NaN here.
    t = jnp.exp(x)
    num = t * (t + 2.0)
    den = num + 2.0
    r = pl.reciprocal(den, approx=True)      # EUP vrcp (separate issue slot)
    r = r * (2.0 - den * r)                  # one Newton step -> ~f32 exact
    y = x * num * r
    # torch.nn.functional.softplus threshold=20: softplus(x)=x for x>20, and
    # tanh(x)==1 in f32 there, so mish(x)==x.
    o_ref[...] = jnp.where(x > 20.0, x, y).astype(o_ref.dtype)


def _mish_jnp(x):
    """Fallback path (plain jnp) using the same cheap identity."""
    xf = x.astype(jnp.float32)
    t = jnp.exp(jnp.minimum(xf, 20.0))
    num = t * (t + 2.0)
    y = xf * num / (num + 2.0)
    return jnp.where(xf > 20.0, xf, y).astype(x.dtype)


def _mish_reference(x):
    """Torch-faithful reference: x * tanh(softplus(x)), threshold=20."""
    xf = x.astype(jnp.float32)
    sp = jnp.where(xf > 20.0, xf, jnp.log1p(jnp.exp(jnp.minimum(xf, 20.0))))
    return (xf * jnp.tanh(sp)).astype(x.dtype)


def _tpu_generation():
    """Return (tensorcores_per_chip, target_block_bytes), conservative on
    detection failure (treated as v5e-like: 1 TC, 2 MiB blocks)."""
    kind = ""
    try:
        kind = jax.devices()[0].device_kind.lower()
    except Exception:
        pass
    if "v6" in kind:                       # v6e: 1 TC, 32 MiB scoped default
        return 1, 4 << 20
    if "v5p" in kind or "v4" in kind:      # megacore (2 TC) chips
        return 2, 4 << 20
    if "v5" in kind:                       # v5e / v5 lite: 16 MiB scoped default
        return 1, 2 << 20
    if "7" in kind:                        # v7x: 2 TCs, ~3.2 TB/s per TC
        return 2, 4 << 20
    return 1, 2 << 20                      # unknown -> conservative


def _pick_block_rows(rows, sub, tc, cap_rows):
    """Block rows: multiple of `sub` (or full extent), <= cap_rows.  Prefers
    an exact division of `rows` (no ragged/masked last block).  On 2-TC chips
    targets an even block count >= 4 (>= 2 pipelined steps per core); on 1-TC
    chips a single whole-array block is fine when it fits."""
    min_blocks = 4 if tc >= 2 else 1
    if rows <= sub:
        return rows
    if min_blocks <= 1 and rows <= cap_rows:
        return rows                          # 1-TC chip: no pointless split
    if tc >= 2 and rows < min_blocks * sub:
        return rows                          # too small to split 4 ways
    want = max(min_blocks, pl.cdiv(rows, cap_rows))
    if tc >= 2 and want % 2:
        want += 1                            # balanced load across both TCs
    if rows % sub == 0:
        nsub = rows // sub
        for g in range(want, min(nsub, want + 63) + 1):
            if nsub % g == 0 and (tc < 2 or g % 2 == 0):
                return (nsub // g) * sub     # exact tiling, no ragged tail
    tr = pl.cdiv(pl.cdiv(rows, want), sub) * sub
    return max(sub, min(tr, rows))           # ragged last block (masked)


def mish(x, *, target_block_bytes=None):
    orig_shape = x.shape
    dtype = x.dtype
    n = x.size
    if n == 0:
        return x

    # Unaligned tails: not worth a pad round-trip (kernel is HBM-bound).
    if n % 128 != 0:
        return _mish_jnp(x)

    tc, default_blk = _tpu_generation()
    if target_block_bytes is None:
        target_block_bytes = default_blk

    itemsize = int(jnp.dtype(dtype).itemsize)
    # Sublane packing granularity: 8 rows for 32-bit, 16 for bf16, 32 for int8.
    sub = max(8, 32 // max(itemsize, 1))

    # Lane-dense slab: widest lane count (multiple of 128, up to 8192) that
    # divides n while keeping at least `sub` rows for dense vregs.
    rows128 = n // 128
    lanes = 128
    for k in (64, 32, 16, 8, 4, 2):
        if rows128 % k == 0 and rows128 // k >= sub:
            lanes = 128 * k
            break
    rows = n // lanes

    cap_rows = max(sub, (target_block_bytes // (itemsize * lanes)) // sub * sub)
    tr = _pick_block_rows(rows, sub, tc, cap_rows)
    grid = (pl.cdiv(rows, tr),)

    # 2 arrays x 2 pipeline buffers; pin the scoped-VMEM limit when blocks are
    # large so we never sit blind against a 16 MiB-style default.  32 MiB is
    # within physical VMEM on every generation (64-128 MiB).
    block_bytes = tr * lanes * itemsize
    vmem_limit = (32 << 20) if 4 * block_bytes > (12 << 20) else None

    x2d = jnp.reshape(x, (rows, lanes))  # contiguous reshape: no copy

    out2d = pl.pallas_call(
        _mish_kernel,
        out_shape=jax.ShapeDtypeStruct((rows, lanes), dtype),
        grid_spec=pltpu.PrefetchScalarGridSpec(
            num_scalar_prefetch=0,
            grid=grid,
            in_specs=[pl.BlockSpec((tr, lanes), lambda i: (i, 0))],
            out_specs=pl.BlockSpec((tr, lanes), lambda i: (i, 0)),
        ),
        compiler_params=pltpu.CompilerParams(
            dimension_semantics=("parallel",),
            vmem_limit_bytes=vmem_limit,
        ),
    )(x2d)

    return jnp.reshape(out2d, orig_shape)


if __name__ == "__main__":
    key = jax.random.PRNGKey(0)
    x = jax.random.normal(key, (2, 4, 16, 16), dtype=jnp.float32)  # NCHW

    out = jax.block_until_ready(mish(x))
    ref = _mish_reference(x)

    assert out.shape == x.shape and out.dtype == x.dtype
    assert jnp.allclose(out, ref, atol=1e-5, rtol=1e-5)
    print("KERNEL_OK")
</pallas_src>

<mosaic_0001>
module attributes {stable_mosaic.version = 11 : i64} {
  func.func @_mish_kernel(%arg0: i32, %arg1: memref<8x256xf32, #tpu.memory_space<vmem>>, %arg2: memref<8x256xf32, #tpu.memory_space<vmem>>) attributes {dimension_semantics = [#tpu.dimension_semantics<parallel>], iteration_bounds = array<i64: 1>, scalar_prefetch = 0 : i64, scratch_operands = 0 : i64, tpu.core_type = #tpu.core_type<tc>, window_params = [{transform_indices = @transform_0, window_bounds = array<i64: 8, 256>}, {transform_indices = @transform_1, window_bounds = array<i64: 8, 256>}]} {
    %c0 = arith.constant 0 : index
    %c0_0 = arith.constant 0 : index
    %0 = vector.load %arg1[%c0, %c0_0] : memref<8x256xf32, #tpu.memory_space<vmem>>, vector<8x256xf32>
    %1 = math.exp %0 : vector<8x256xf32>
    %cst = arith.constant 2.000000e+00 : f32
    %2 = vector.broadcast %cst : f32 to vector<8x256xf32>
    %3 = arith.addf %1, %2 : vector<8x256xf32>
    %4 = arith.mulf %1, %3 : vector<8x256xf32>
    %cst_1 = arith.constant 2.000000e+00 : f32
    %5 = vector.broadcast %cst_1 : f32 to vector<8x256xf32>
    %6 = arith.addf %4, %5 : vector<8x256xf32>
    %7 = tpu.reciprocal %6 {approx = true} : vector<8x256xf32> -> vector<8x256xf32>
    %8 = arith.mulf %6, %7 : vector<8x256xf32>
    %cst_2 = arith.constant 2.000000e+00 : f32
    %9 = vector.broadcast %cst_2 : f32 to vector<8x256xf32>
    %10 = arith.subf %9, %8 : vector<8x256xf32>
    %11 = arith.mulf %7, %10 : vector<8x256xf32>
    %12 = arith.mulf %0, %4 : vector<8x256xf32>
    %13 = arith.mulf %12, %11 : vector<8x256xf32>
    %cst_3 = arith.constant 2.000000e+01 : f32
    %14 = vector.broadcast %cst_3 : f32 to vector<8x256xf32>
    %15 = arith.cmpf ogt, %0, %14 : vector<8x256xf32>
    %16 = arith.select %15, %0, %13 : vector<8x256xi1>, vector<8x256xf32>
    %c0_4 = arith.constant 0 : index
    %c0_5 = arith.constant 0 : index
    %17 = vector.load %arg2[%c0_4, %c0_5] : memref<8x256xf32, #tpu.memory_space<vmem>>, vector<8x256xf32>
    tpu.vector_store %arg2[%c0_4, %c0_5], %16 {strides = array<i32>} : memref<8x256xf32, #tpu.memory_space<vmem>>, vector<8x256xf32>,
    return
  }
  func.func @transform_0(%arg0: i32) -> (i32, i32) {
    %c0_i32 = arith.constant 0 : i32
    %c0_i32_0 = arith.constant 0 : i32
    return %arg0, %c0_i32 : i32, i32
  }
  func.func @transform_1(%arg0: i32) -> (i32, i32) {
    %c0_i32 = arith.constant 0 : i32
    %c0_i32_0 = arith.constant 0 : i32
    return %arg0, %c0_i32 : i32, i32
  }
}

</mosaic_0001>

<llo_original>
// kernel: tpu_custom_call.1
$region0: #{tpu_custom_call.1}
  #allocation0 [shape = 'u32[]', space=smem, size = 0x4, offset = 0x4, fixed_abs, tag = 'smem constant byte address 0x4 - core index']
  #allocation1 [shape = 'u32[144,128]{1,0:T(1,128)}', space=vmem, size = 0x12000, scoped, tag = 'internal scratch']
  %s0 = inlined_call_operand.hbm [shape: f32[8,256], index: 0, kind: input, shape index: {}]
  %s1 = inlined_call_operand.hbm [shape: f32[8,256], index: 1, kind: output, shape index: {}]
  %s2 = sld [smem:[#allocation0]]
  $region18: #{tpu_custom_call.1} parent=0
    _
  %s4 = ssub.s32 1, %s2
  %s5 = scalar_select 0, %s4, %s2
  $region1: #{tpu_custom_call.1} parent=0
    #allocation2 [shape = 'u8[8192]{0}', space=vmem, size = 0x2000, scoped, tag = 'input window, operand 0, single buffered']
    #allocation3 [shape = 's32[1]{0}', space=sflag, size = 0x4, scoped, tag = 'scoped memory for tpu_custom_call.1']
    #allocation4 [shape = 's32[1]{0}', space=sflag, size = 0x4, scoped, tag = 'scoped memory for tpu_custom_call.1']
    #allocation5 [shape = 'u8[8192]{0}', space=vmem, size = 0x2000, scoped, tag = 'output window, operand 0, single buffered']
    %6 = vsyncpa [#allocation3], 0
    %7 = vsyncpa [#allocation4], 0
    // Predicated region
    $region2: #{tpu_custom_call.1} parent=1 // pred_check
      _
    $region3: #{tpu_custom_call.1} parent=1 // pred_check_branch
      %9 = sbr.rel (0) target = $region5
    $region4: #{tpu_custom_call.1} parent=1 // pred_region
      %s11 = ssub.s32 256, 256
      %12 = vsyncadd [#allocation3], %s11
      %s14 = sshll.u32 [#allocation2], 4
      %s15 = int_to_ptr.vmem [resolvable:$true] %s14
      %17 = dma.hbm_to_vmem [thread:$0]  %s0, 256, %s15, [#allocation3]
    $region5: #{tpu_custom_call.1} parent=1 // pred_fallthru
      _
    // Predicated region
    $region6: #{tpu_custom_call.1} parent=1 // pred_check
      _
    $region7: #{tpu_custom_call.1} parent=1 // pred_check_branch
      %19 = sbr.rel (0) target = $region9
    $region8: #{tpu_custom_call.1} parent=1 // pred_region
      %20 = dma.done [#allocation3], 256
    $region9: #{tpu_custom_call.1} parent=1 // pred_fallthru
      _
    %v21 = vld [vmem:[#allocation2] sm:$0xff]
    %v22 = vld [vmem:[#allocation2 + $0x8] sm:$0xff]
    %v23 = vmul.f32 %v21, 1.442695
    %v24 = vpow.pop %v23
    %v25 = vmul.f32 %v22, 1.442695
    %v26 = vpow.pop %v25
    %v27 = vadd.f32 %v24, 2.0
    %v28 = vadd.f32 %v26, 2.0
    %v29 = vmul.f32 %v24, %v27
    %v30 = vmul.f32 %v26, %v28
    %v31 = vadd.f32 %v29, 2.0
    %v32 = vadd.f32 %v30, 2.0
    %v33 = vrcp.pop %v31
    %v34 = vrcp.pop %v32
    %v35 = vmul.f32 %v31, %v33
    %v36 = vmul.f32 %v32, %v34
    %v37 = vsub.f32 2.0, %v35
    %v38 = vsub.f32 2.0, %v36
    %v39 = vmul.f32 %v33, %v37
    %v40 = vmul.f32 %v34, %v38
    %v41 = vmul.f32 %v21, %v29
    %v42 = vmul.f32 %v22, %v30
    %v43 = vmul.f32 %v41, %v39
    %v44 = vmul.f32 %v42, %v40
    %vm45 = vcmp.gt.f32.partialorder %v21, 20.0
    %vm46 = vcmp.gt.f32.partialorder %v22, 20.0
    %v47 = vsel %vm45, %v21, %v43
    %v48 = vsel %vm46, %v22, %v44
    %49 = vst [vmem:[#allocation5] sm:$0xff] %v47
    %50 = vst [vmem:[#allocation5 + $0x8] sm:$0xff] %v48
    // Predicated region
    $region10: #{tpu_custom_call.1} parent=1 // pred_check
      _
    $region11: #{tpu_custom_call.1} parent=1 // pred_check_branch
      %52 = sbr.rel (0) target = $region13
    $region12: #{tpu_custom_call.1} parent=1 // pred_region
      %s54 = ssub.s32 256, 256
      %55 = vsyncadd [#allocation4], %s54
      %s57 = sshll.u32 [#allocation5], 4
      %s58 = int_to_ptr.vmem [resolvable:$true] %s57
      %60 = dma.vmem_to_hbm [thread:$0]  %s58, 256, %s1, [#allocation4]
    $region13: #{tpu_custom_call.1} parent=1 // pred_fallthru
      _
    // Predicated region
    $region14: #{tpu_custom_call.1} parent=1 // pred_check
      _
    $region15: #{tpu_custom_call.1} parent=1 // pred_check_branch
      %62 = sbr.rel (0) target = $region17
    $region16: #{tpu_custom_call.1} parent=1 // pred_region
      %63 = dma.done [#allocation4], 256
    $region17: #{tpu_custom_call.1} parent=1 // pred_fallthru
      _
    %64 = vsyncpa [#allocation3], 1
    %65 = vsyncpa [#allocation4], 1

</llo_original>
